<compile_context>
chip_gen: v7x
topology: tpu7x:2x2x1
jax: 0.10.0
libtpu: 0.0.40
codegen_flags: <defaults>
</compile_context>

<pallas_src>
import jax
import jax.numpy as jnp
from jax.experimental import pallas as pl
from jax.experimental.pallas import tpu as pltpu


def _round_up(x, m):
    return ((x + m - 1) // m) * m


def _lovasz_tile_kernel(err_ref, fg_ref, gts_ref, out_ref, cs_carry_ref, jac_prev_ref):
    """err_ref, fg_ref : [C, TP] f32 tiles (per-class descending-error order).

    gts_ref  : [C, 1] f32   total foreground count per class (over full P).
    out_ref  : [1, 1] f32   accumulated loss (resident across grid steps).
    cs_carry_ref, jac_prev_ref : [C, 1] f32 VMEM carries across lane tiles.
    """
    t = pl.program_id(0)

    @pl.when(t == 0)
    def _():
        out_ref[...] = jnp.zeros_like(out_ref)
        cs_carry_ref[...] = jnp.zeros_like(cs_carry_ref)
        jac_prev_ref[...] = jnp.zeros_like(jac_prev_ref)

    err = err_ref[...]                                   # [C, TP]
    fg = fg_ref[...]                                     # [C, TP]
    gts = gts_ref[...]                                   # [C, 1]
    C, TP = fg.shape

    lane = jax.lax.broadcasted_iota(jnp.int32, (C, TP), 1)

    # Inclusive cumulative sum along lanes: Hillis-Steele scan with XLU rolls.
    x = fg
    s = 1
    while s < TP:
        shifted = pltpu.roll(x, shift=s, axis=1)
        x = x + jnp.where(lane >= s, shifted, 0.0)
        s *= 2
    cs_fg = x + cs_carry_ref[...]                        # add carry from previous tiles

    # Global 1-based position; cumsum(1 - fg) == pos - cumsum(fg) exactly.
    pos = (t * TP + lane + 1).astype(jnp.float32)
    intersection = gts - cs_fg
    union = gts + (pos - cs_fg)
    jaccard = 1.0 - intersection * pl.reciprocal(union, approx=True)

    # lovasz_grad: first difference along lanes, carrying jac[-1] across tiles.
    jac_shift = pltpu.roll(jaccard, shift=1, axis=1)
    jac_shift = jnp.where(lane == 0, jac_prev_ref[...], jac_shift)
    grad = jaccard - jac_shift

    out_ref[...] = out_ref[...] + jnp.sum(err * grad) * (1.0 / C)

    # Carries for the next tile.
    cs_carry_ref[...] = cs_fg[:, TP - 1:TP]
    jac_prev_ref[...] = jaccard[:, TP - 1:TP]


def lovasz_softmax_pallas(probas, labels, tile_p=2048):
    """probas, labels: [B, C, T, H, W] float arrays (PyTorch NCTHW layout)."""
    B, C, T, H, W = probas.shape
    P = B * T * H * W

    # Build [C, P] layout directly (classes on sublanes, pixels on lanes).
    # Pixel ordering differs from the reference's NTHWC flattening, but each
    # class is sorted independently so the loss is identical.
    p_t = jnp.transpose(probas, (1, 0, 2, 3, 4)).reshape(C, -1).astype(jnp.float32)
    fg_t = jnp.transpose(labels, (1, 0, 2, 3, 4)).reshape(C, -1).astype(jnp.float32)
    err_t = jnp.abs(fg_t - p_t)

    gts = jnp.sum(fg_t, axis=1, keepdims=True)           # [C, 1]

    # TODO(synk): descending sort + permutation gather have no Pallas TPU
    # primitive; done in plain JAX with a single fused gather of the stacked
    # (err, fg) array.  Everything downstream runs in the kernel.
    order = jnp.argsort(-err_t, axis=1)
    stacked = jnp.stack([err_t, fg_t], axis=0)           # [2, C, P]
    idx = jnp.broadcast_to(order[None, :, :], (2, C, P))
    gathered = jnp.take_along_axis(stacked, idx, axis=2)
    err_sorted, fg_sorted = gathered[0], gathered[1]

    # Lane tile size: multiple of 128, capped by (padded) P.
    tp = min(_round_up(tile_p, 128), _round_up(P, 128))
    P_pad = _round_up(P, tp)
    if P_pad != P:
        # err=0 / fg=0 padding after the sorted tail contributes 0 to the dot.
        pad = ((0, 0), (0, P_pad - P))
        err_sorted = jnp.pad(err_sorted, pad)
        fg_sorted = jnp.pad(fg_sorted, pad)
    n_tiles = P_pad // tp

    out = pl.pallas_call(
        _lovasz_tile_kernel,
        out_shape=jax.ShapeDtypeStruct((1, 1), jnp.float32),
        grid=(n_tiles,),
        in_specs=[
            pl.BlockSpec((C, tp), lambda t: (0, t)),
            pl.BlockSpec((C, tp), lambda t: (0, t)),
            pl.BlockSpec((C, 1), lambda t: (0, 0)),
        ],
        out_specs=pl.BlockSpec((1, 1), lambda t: (0, 0)),
        scratch_shapes=[
            pltpu.VMEM((C, 1), jnp.float32),             # cumsum carry
            pltpu.VMEM((C, 1), jnp.float32),             # last-jaccard carry
        ],
        compiler_params=pltpu.CompilerParams(
            dimension_semantics=("arbitrary",),          # sequential cumsum carry
            vmem_limit_bytes=32 * 1024 * 1024,
        ),
    )(err_sorted, fg_sorted, gts)
    return out[0, 0]


def lovasz_softmax_ref(probas, labels):
    """Pure-JAX reference mirroring the PyTorch code, for verification."""
    B, C, T, H, W = probas.shape
    p = jnp.transpose(probas, (0, 2, 3, 4, 1)).reshape(-1, C).astype(jnp.float32)
    l = jnp.transpose(labels, (0, 2, 3, 4, 1)).reshape(-1, C).astype(jnp.float32)
    losses = []
    for c in range(C):
        fg = l[:, c]
        pred = p[:, c]
        errors = jnp.abs(fg - pred)
        order = jnp.argsort(-errors)
        e_s = errors[order]
        fg_s = fg[order]
        gts_c = fg_s.sum()
        inter = gts_c - jnp.cumsum(fg_s)
        union = gts_c + jnp.cumsum(1.0 - fg_s)
        jac = 1.0 - inter / union
        jac = jnp.concatenate([jac[:1], jac[1:] - jac[:-1]])
        losses.append(jnp.dot(e_s, jac))
    total = losses[0]
    for c in range(1, C):
        total = total + losses[c]
    return total / C


if __name__ == "__main__":
    key = jax.random.PRNGKey(0)
    B, C, T, H, W = 2, 4, 2, 8, 8          # P = B*T*H*W = 256

    k1, k2 = jax.random.split(key)
    logits = jax.random.normal(k1, (B, C, T, H, W), dtype=jnp.float32)
    probas = jax.nn.softmax(logits, axis=1)                       # probabilities over class dim
    lab_idx = jax.random.randint(k2, (B, T, H, W), 0, C)          # ground-truth class ids
    labels = jnp.transpose(jax.nn.one_hot(lab_idx, C, dtype=jnp.float32),
                           (0, 4, 1, 2, 3))                       # [B, C, T, H, W] one-hot

    # tile_p=128 -> 2 lane tiles, exercising the cross-tile cumsum/jaccard carry.
    loss = jax.block_until_ready(lovasz_softmax_pallas(probas, labels, tile_p=128))
    ref = jax.block_until_ready(lovasz_softmax_ref(probas, labels))

    assert jnp.isfinite(loss), "non-finite loss"
    # 2e-3 tolerance leaves headroom for the EUP approximate reciprocal.
    assert abs(float(loss) - float(ref)) < 2e-3, (float(loss), float(ref))
    print("KERNEL_OK")
</pallas_src>

<mosaic_0001>
module attributes {stable_mosaic.version = 11 : i64} {
  func.func @_lovasz_tile_kernel(%arg0: i32, %arg1: memref<4x128xf32, #tpu.memory_space<vmem>>, %arg2: memref<4x128xf32, #tpu.memory_space<vmem>>, %arg3: memref<4x1xf32, #tpu.memory_space<vmem>>, %arg4: memref<1x1xf32, #tpu.memory_space<vmem>>, %arg5: memref<4x1xf32, #tpu.memory_space<vmem>>, %arg6: memref<4x1xf32, #tpu.memory_space<vmem>>) attributes {dimension_semantics = [#tpu.dimension_semantics<arbitrary>], iteration_bounds = array<i64: 2>, scalar_prefetch = 0 : i64, scratch_operands = 2 : i64, tpu.core_type = #tpu.core_type<tc>, window_params = [{transform_indices = @transform_0, window_bounds = array<i64: 4, 128>}, {transform_indices = @transform_1, window_bounds = array<i64: 4, 128>}, {pipeline_mode = #tpu.pipeline_mode<synchronous>, transform_indices = @transform_2, window_bounds = array<i64: 4, 1>}, {pipeline_mode = #tpu.pipeline_mode<synchronous>, transform_indices = @transform_3, window_bounds = array<i64: 1, 1>}]} {
    %c0_i32 = arith.constant 0 : i32
    %0 = arith.cmpi eq, %arg0, %c0_i32 : i32
    %1 = arith.extui %0 : i1 to i32
    %c0_i32_0 = arith.constant 0 : i32
    %2 = arith.cmpi ne, %1, %c0_i32_0 : i32
    scf.if %2 {
      %cst_37 = arith.constant 0.000000e+00 : f32
      %89 = vector.broadcast %cst_37 : f32 to vector<1x1xf32>
      %c0_38 = arith.constant 0 : index
      %c0_39 = arith.constant 0 : index
      %90 = vector.load %arg4[%c0_38, %c0_39] : memref<1x1xf32, #tpu.memory_space<vmem>>, vector<1x1xf32>
      tpu.vector_store %arg4[%c0_38, %c0_39], %89 {strides = array<i32>} : memref<1x1xf32, #tpu.memory_space<vmem>>, vector<1x1xf32>,
      %cst_40 = arith.constant 0.000000e+00 : f32
      %91 = vector.broadcast %cst_40 : f32 to vector<4x1xf32>
      %c0_41 = arith.constant 0 : index
      %c0_42 = arith.constant 0 : index
      %92 = vector.load %arg5[%c0_41, %c0_42] : memref<4x1xf32, #tpu.memory_space<vmem>>, vector<4x1xf32>
      tpu.vector_store %arg5[%c0_41, %c0_42], %91 {strides = array<i32>} : memref<4x1xf32, #tpu.memory_space<vmem>>, vector<4x1xf32>,
      %cst_43 = arith.constant 0.000000e+00 : f32
      %93 = vector.broadcast %cst_43 : f32 to vector<4x1xf32>
      %c0_44 = arith.constant 0 : index
      %c0_45 = arith.constant 0 : index
      %94 = vector.load %arg6[%c0_44, %c0_45] : memref<4x1xf32, #tpu.memory_space<vmem>>, vector<4x1xf32>
      tpu.vector_store %arg6[%c0_44, %c0_45], %93 {strides = array<i32>} : memref<4x1xf32, #tpu.memory_space<vmem>>, vector<4x1xf32>,
    } else {
    }
    %c0 = arith.constant 0 : index
    %c0_1 = arith.constant 0 : index
    %3 = vector.load %arg1[%c0, %c0_1] : memref<4x128xf32, #tpu.memory_space<vmem>>, vector<4x128xf32>
    %c0_2 = arith.constant 0 : index
    %c0_3 = arith.constant 0 : index
    %4 = vector.load %arg2[%c0_2, %c0_3] : memref<4x128xf32, #tpu.memory_space<vmem>>, vector<4x128xf32>
    %c0_4 = arith.constant 0 : index
    %c0_5 = arith.constant 0 : index
    %5 = vector.load %arg3[%c0_4, %c0_5] : memref<4x1xf32, #tpu.memory_space<vmem>>, vector<4x1xf32>
    %6 = tpu.iota {dimensions = array<i32: 1>} : vector<4x128xi32>
    %c1_i32 = arith.constant 1 : i32
    %7 = tpu.dynamic_rotate %4 by %c1_i32 dim 1 : vector<4x128xf32>, i32 -> vector<4x128xf32>
    %c1_i32_6 = arith.constant 1 : i32
    %8 = vector.broadcast %c1_i32_6 : i32 to vector<4x128xi32>
    %9 = arith.cmpi sge, %6, %8 : vector<4x128xi32>
    %cst = arith.constant 0.000000e+00 : f32
    %10 = vector.broadcast %cst : f32 to vector<4x128xf32>
    %11 = arith.select %9, %7, %10 : vector<4x128xi1>, vector<4x128xf32>
    %12 = arith.addf %4, %11 : vector<4x128xf32>
    %c2_i32 = arith.constant 2 : i32
    %13 = tpu.dynamic_rotate %12 by %c2_i32 dim 1 : vector<4x128xf32>, i32 -> vector<4x128xf32>
    %c2_i32_7 = arith.constant 2 : i32
    %14 = vector.broadcast %c2_i32_7 : i32 to vector<4x128xi32>
    %15 = arith.cmpi sge, %6, %14 : vector<4x128xi32>
    %cst_8 = arith.constant 0.000000e+00 : f32
    %16 = vector.broadcast %cst_8 : f32 to vector<4x128xf32>
    %17 = arith.select %15, %13, %16 : vector<4x128xi1>, vector<4x128xf32>
    %18 = arith.addf %12, %17 : vector<4x128xf32>
    %c4_i32 = arith.constant 4 : i32
    %19 = tpu.dynamic_rotate %18 by %c4_i32 dim 1 : vector<4x128xf32>, i32 -> vector<4x128xf32>
    %c4_i32_9 = arith.constant 4 : i32
    %20 = vector.broadcast %c4_i32_9 : i32 to vector<4x128xi32>
    %21 = arith.cmpi sge, %6, %20 : vector<4x128xi32>
    %cst_10 = arith.constant 0.000000e+00 : f32
    %22 = vector.broadcast %cst_10 : f32 to vector<4x128xf32>
    %23 = arith.select %21, %19, %22 : vector<4x128xi1>, vector<4x128xf32>
    %24 = arith.addf %18, %23 : vector<4x128xf32>
    %c8_i32 = arith.constant 8 : i32
    %25 = tpu.dynamic_rotate %24 by %c8_i32 dim 1 : vector<4x128xf32>, i32 -> vector<4x128xf32>
    %c8_i32_11 = arith.constant 8 : i32
    %26 = vector.broadcast %c8_i32_11 : i32 to vector<4x128xi32>
    %27 = arith.cmpi sge, %6, %26 : vector<4x128xi32>
    %cst_12 = arith.constant 0.000000e+00 : f32
    %28 = vector.broadcast %cst_12 : f32 to vector<4x128xf32>
    %29 = arith.select %27, %25, %28 : vector<4x128xi1>, vector<4x128xf32>
    %30 = arith.addf %24, %29 : vector<4x128xf32>
    %c16_i32 = arith.constant 16 : i32
    %31 = tpu.dynamic_rotate %30 by %c16_i32 dim 1 : vector<4x128xf32>, i32 -> vector<4x128xf32>
    %c16_i32_13 = arith.constant 16 : i32
    %32 = vector.broadcast %c16_i32_13 : i32 to vector<4x128xi32>
    %33 = arith.cmpi sge, %6, %32 : vector<4x128xi32>
    %cst_14 = arith.constant 0.000000e+00 : f32
    %34 = vector.broadcast %cst_14 : f32 to vector<4x128xf32>
    %35 = arith.select %33, %31, %34 : vector<4x128xi1>, vector<4x128xf32>
    %36 = arith.addf %30, %35 : vector<4x128xf32>
    %c32_i32 = arith.constant 32 : i32
    %37 = tpu.dynamic_rotate %36 by %c32_i32 dim 1 : vector<4x128xf32>, i32 -> vector<4x128xf32>
    %c32_i32_15 = arith.constant 32 : i32
    %38 = vector.broadcast %c32_i32_15 : i32 to vector<4x128xi32>
    %39 = arith.cmpi sge, %6, %38 : vector<4x128xi32>
    %cst_16 = arith.constant 0.000000e+00 : f32
    %40 = vector.broadcast %cst_16 : f32 to vector<4x128xf32>
    %41 = arith.select %39, %37, %40 : vector<4x128xi1>, vector<4x128xf32>
    %42 = arith.addf %36, %41 : vector<4x128xf32>
    %c64_i32 = arith.constant 64 : i32
    %43 = tpu.dynamic_rotate %42 by %c64_i32 dim 1 : vector<4x128xf32>, i32 -> vector<4x128xf32>
    %c64_i32_17 = arith.constant 64 : i32
    %44 = vector.broadcast %c64_i32_17 : i32 to vector<4x128xi32>
    %45 = arith.cmpi sge, %6, %44 : vector<4x128xi32>
    %cst_18 = arith.constant 0.000000e+00 : f32
    %46 = vector.broadcast %cst_18 : f32 to vector<4x128xf32>
    %47 = arith.select %45, %43, %46 : vector<4x128xi1>, vector<4x128xf32>
    %48 = arith.addf %42, %47 : vector<4x128xf32>
    %c0_19 = arith.constant 0 : index
    %c0_20 = arith.constant 0 : index
    %49 = vector.load %arg5[%c0_19, %c0_20] : memref<4x1xf32, #tpu.memory_space<vmem>>, vector<4x1xf32>
    %50 = vector.broadcast %49 : vector<4x1xf32> to vector<4x128xf32>
    %51 = arith.addf %48, %50 : vector<4x128xf32>
    %c128_i32 = arith.constant 128 : i32
    %52 = arith.muli %arg0, %c128_i32 : i32
    %53 = vector.broadcast %52 : i32 to vector<4x128xi32>
    %54 = arith.addi %53, %6 : vector<4x128xi32>
    %c1_i32_21 = arith.constant 1 : i32
    %55 = vector.broadcast %c1_i32_21 : i32 to vector<4x128xi32>
    %56 = arith.addi %54, %55 : vector<4x128xi32>
    %57 = arith.sitofp %56 : vector<4x128xi32> to vector<4x128xf32>
    %58 = vector.broadcast %5 : vector<4x1xf32> to vector<4x128xf32>
    %59 = arith.subf %58, %51 : vector<4x128xf32>
    %60 = arith.subf %57, %51 : vector<4x128xf32>
    %61 = vector.broadcast %5 : vector<4x1xf32> to vector<4x128xf32>
    %62 = arith.addf %61, %60 : vector<4x128xf32>
    %63 = tpu.reciprocal %62 {approx = true} : vector<4x128xf32> -> vector<4x128xf32>
    %64 = arith.mulf %59, %63 : vector<4x128xf32>
    %cst_22 = arith.constant 1.000000e+00 : f32
    %65 = vector.broadcast %cst_22 : f32 to vector<4x128xf32>
    %66 = arith.subf %65, %64 : vector<4x128xf32>
    %c1_i32_23 = arith.constant 1 : i32
    %67 = tpu.dynamic_rotate %66 by %c1_i32_23 dim 1 : vector<4x128xf32>, i32 -> vector<4x128xf32>
    %c0_i32_24 = arith.constant 0 : i32
    %68 = vector.broadcast %c0_i32_24 : i32 to vector<4x128xi32>
    %69 = arith.cmpi eq, %6, %68 : vector<4x128xi32>
    %c0_25 = arith.constant 0 : index
    %c0_26 = arith.constant 0 : index
    %70 = vector.load %arg6[%c0_25, %c0_26] : memref<4x1xf32, #tpu.memory_space<vmem>>, vector<4x1xf32>
    %71 = vector.shape_cast %70 : vector<4x1xf32> to vector<4x1xf32>
    %72 = vector.broadcast %71 : vector<4x1xf32> to vector<4x128xf32>
    %73 = arith.select %69, %72, %67 : vector<4x128xi1>, vector<4x128xf32>
    %74 = arith.subf %66, %73 : vector<4x128xf32>
    %c0_27 = arith.constant 0 : index
    %c0_28 = arith.constant 0 : index
    %75 = vector.load %arg4[%c0_27, %c0_28] : memref<1x1xf32, #tpu.memory_space<vmem>>, vector<1x1xf32>
    %76 = arith.mulf %3, %74 : vector<4x128xf32>
    %77 = vector.shape_cast %76 : vector<4x128xf32> to vector<1x4x128xf32>
    %cst_29 = arith.constant dense<0.000000e+00> : vector<1xf32>
    %78 = vector.multi_reduction <add>, %77, %cst_29 [1, 2] : vector<1x4x128xf32> to vector<1xf32>
    %79 = vector.shape_cast %78 : vector<1xf32> to vector<1x1x1xf32>
    %80 = vector.extract %79[0, 0, 0] : f32 from vector<1x1x1xf32>
    %cst_30 = arith.constant 2.500000e-01 : f32
    %81 = arith.mulf %80, %cst_30 : f32
    %82 = vector.broadcast %81 : f32 to vector<1x1xf32>
    %83 = arith.addf %75, %82 : vector<1x1xf32>
    %c0_31 = arith.constant 0 : index
    %c0_32 = arith.constant 0 : index
    %84 = vector.load %arg4[%c0_31, %c0_32] : memref<1x1xf32, #tpu.memory_space<vmem>>, vector<1x1xf32>
    tpu.vector_store %arg4[%c0_31, %c0_32], %83 {strides = array<i32>} : memref<1x1xf32, #tpu.memory_space<vmem>>, vector<1x1xf32>,
    %85 = vector.extract_strided_slice %51 {offsets = [0, 127], sizes = [4, 1], strides = [1, 1]} : vector<4x128xf32> to vector<4x1xf32>
    %c0_33 = arith.constant 0 : index
    %c0_34 = arith.constant 0 : index
    %86 = vector.load %arg5[%c0_33, %c0_34] : memref<4x1xf32, #tpu.memory_space<vmem>>, vector<4x1xf32>
    tpu.vector_store %arg5[%c0_33, %c0_34], %85 {strides = array<i32>} : memref<4x1xf32, #tpu.memory_space<vmem>>, vector<4x1xf32>,
    %87 = vector.extract_strided_slice %66 {offsets = [0, 127], sizes = [4, 1], strides = [1, 1]} : vector<4x128xf32> to vector<4x1xf32>
    %c0_35 = arith.constant 0 : index
    %c0_36 = arith.constant 0 : index
    %88 = vector.load %arg6[%c0_35, %c0_36] : memref<4x1xf32, #tpu.memory_space<vmem>>, vector<4x1xf32>
    tpu.vector_store %arg6[%c0_35, %c0_36], %87 {strides = array<i32>} : memref<4x1xf32, #tpu.memory_space<vmem>>, vector<4x1xf32>,
    return
  }
  func.func @transform_0(%arg0: i32) -> (i32, i32) {
    %c0_i32 = arith.constant 0 : i32
    %c0_i32_0 = arith.constant 0 : i32
    return %c0_i32, %arg0 : i32, i32
  }
  func.func @transform_1(%arg0: i32) -> (i32, i32) {
    %c0_i32 = arith.constant 0 : i32
    %c0_i32_0 = arith.constant 0 : i32
    return %c0_i32, %arg0 : i32, i32
  }
  func.func @transform_2(%arg0: i32) -> (i32, i32) {
    %c0_i32 = arith.constant 0 : i32
    %c0_i32_0 = arith.constant 0 : i32
    %c0_i32_1 = arith.constant 0 : i32
    return %c0_i32, %c0_i32_0 : i32, i32
  }
  func.func @transform_3(%arg0: i32) -> (i32, i32) {
    %c0_i32 = arith.constant 0 : i32
    %c0_i32_0 = arith.constant 0 : i32
    %c0_i32_1 = arith.constant 0 : i32
    return %c0_i32, %c0_i32_0 : i32, i32
  }
}

</mosaic_0001>

<llo_original>
// kernel: tpu_custom_call.1
$region0: #{tpu_custom_call.1}
  #allocation0 [shape = 'u32[]', space=smem, size = 0x4, offset = 0x4, fixed_abs, tag = 'smem constant byte address 0x4 - core index']
  #allocation1 [shape = 'u32[144,128]{1,0:T(1,128)}', space=vmem, size = 0x12000, scoped, tag = 'internal scratch']
  #allocation2 [shape = 'f32[4,1]{1,0:T(4,128)}', space=vmem, size = 0x800, scoped, tag = 'scratch operand']
  #allocation3 [shape = 'f32[4,1]{1,0:T(4,128)}', space=vmem, size = 0x800, scoped, tag = 'scratch operand']
  %s0 = inlined_call_operand.hbm [shape: f32[4,256], index: 0, kind: input, shape index: {}]
  %s1 = inlined_call_operand.vmem [shape: f32[4,256], index: 1, kind: input, shape index: {}]
  %s2 = inlined_call_operand.vmem [shape: f32[4,1], index: 2, kind: input, shape index: {}]
  %s3 = inlined_call_operand.hbm [shape: f32[1,1], index: 3, kind: output, shape index: {}]
  %s4 = sld [smem:[#allocation0]]
  $region53: #{tpu_custom_call.1} parent=0
    _
  %s6 = ssub.s32 1, %s4
  %s7 = scalar_select 0, %s6, %s4
  $region1: #{tpu_custom_call.1} parent=0
    #allocation4 [shape = 'u8[4096]{0}', space=vmem, size = 0x1000, scoped, tag = 'input window, operand 0']
    #allocation5 [shape = 's32[2]{0}', space=sflag, size = 0x8, scoped, tag = 'scoped memory for tpu_custom_call.1']
    #allocation6 [shape = 's32[2]{0}', space=sflag, size = 0x8, scoped, tag = 'scoped memory for tpu_custom_call.1']
    #allocation7 [shape = 'u8[512]{0}', space=vmem, size = 0x400, scoped, tag = 'output window, operand 0, single buffered']
    %8 = vsyncpa [#allocation5], 0
    %s9 = scalar_lea.sflag [#allocation5], 1
    %10 = vsyncpa %s9, 0
    %11 = vsyncpa [#allocation6], 0
    loop: start=0, step=1, limit=4
    $region2: #{tpu_custom_call.1} parent=1 // loop_pre_header
      _
    $region3: #{tpu_custom_call.1} parent=1 // loop_header
      %s13 = sphi 0, %s17
      %p14 = scmp.ge.s32.totalorder %s13, 4
      %s23 = sphi 0, %s25
      %s26 = sphi 0, %s23
      %s27 = sphi 0, %s26
      %s43 = sphi 0, %s27
      %s49 = sphi 0, %s51
      %s52 = sphi 0, %s49
      %s53 = sphi 0, %s52
      %s69 = sphi 0, %s53
      %s73 = sphi 0, %s73
      %s75 = sphi 0, %s73
      %s76 = sphi 0, %s75
      %s90 = sphi 0, %s76
      %s94 = sphi 0, %s94
      %s96 = sphi 0, %s94
      %s97 = sphi 0, %s96
      %s111 = sphi 0, %s97
    $region4: #{tpu_custom_call.1} parent=1 // loop_header_branch
      %16 = sbr.rel (%p14) target = $region8
    $region5: #{tpu_custom_call.1} parent=1 // loop_body
      %s18 = ssub.s32 %s13, 1
      %s19 = ssub.s32 %s13, 2
      %s20 = sadd.s32 %s13, 1
      %s21 = ssub.s32 %s13, %s20
      %p22 = scmp.eq.s32.totalorder %s21, 0
      %s24 = sadd.s32 %s23, 1
      %s25 = scalar_select %p22, %s23, %s24
      %p28 = pneg %p22
      %p29 = scmp.eq.s32.totalorder %s13, 1
      %p30 = por %p28, %p29
      %p31 = scmp.ne.s32.totalorder %s23, %s26
      %p32 = scmp.eq.s32.totalorder %s13, 0
      %p33 = por %p31, %p32
      %p34 = scmp.ne.s32.totalorder %s23, %s26
      %p35 = scmp.eq.s32.totalorder %s18, 1
      %p36 = por %p34, %p35
      %p37 = scmp.ne.s32.totalorder %s26, %s27
      %p38 = scmp.eq.s32.totalorder %s18, 0
      %p39 = por %p37, %p38
      %p40 = scmp.ne.s32.totalorder %s26, %s27
      %p41 = scmp.eq.s32.totalorder %s19, 1
      %p42 = por %p40, %p41
      %p44 = scmp.ne.s32.totalorder %s27, %s43
      %p45 = scmp.eq.s32.totalorder %s19, 0
      %p46 = por %p44, %p45
      %s47 = ssub.s32 %s13, %s20
      %p48 = scmp.eq.s32.totalorder %s47, 0
      %s50 = sadd.s32 %s49, 1
      %s51 = scalar_select %p48, %s49, %s50
      %p54 = pneg %p48
      %p55 = scmp.eq.s32.totalorder %s13, 1
      %p56 = por %p54, %p55
      %p57 = scmp.ne.s32.totalorder %s49, %s52
      %p58 = scmp.eq.s32.totalorder %s13, 0
      %p59 = por %p57, %p58
      %p60 = scmp.ne.s32.totalorder %s49, %s52
      %p61 = scmp.eq.s32.totalorder %s18, 1
      %p62 = por %p60, %p61
      %p63 = scmp.ne.s32.totalorder %s52, %s53
      %p64 = scmp.eq.s32.totalorder %s18, 0
      %p65 = por %p63, %p64
      %p66 = scmp.ne.s32.totalorder %s52, %s53
      %p67 = scmp.eq.s32.totalorder %s19, 1
      %p68 = por %p66, %p67
      %p70 = scmp.ne.s32.totalorder %s53, %s69
      %p71 = scmp.eq.s32.totalorder %s19, 0
      %p72 = por %p70, %p71
      %s74 = sadd.s32 %s73, 1
      %p77 = scmp.eq.s32.totalorder %s13, 1
      %p78 = scmp.ne.s32.totalorder %s73, %s75
      %p79 = scmp.eq.s32.totalorder %s13, 0
      %p80 = por %p78, %p79
      %p81 = scmp.ne.s32.totalorder %s73, %s75
      %p82 = scmp.eq.s32.totalorder %s18, 1
      %p83 = por %p81, %p82
      %p84 = scmp.ne.s32.totalorder %s75, %s76
      %p85 = scmp.eq.s32.totalorder %s18, 0
      %p86 = por %p84, %p85
      %p87 = scmp.ne.s32.totalorder %s75, %s76
      %p88 = scmp.eq.s32.totalorder %s19, 1
      %p89 = por %p87, %p88
      %p91 = scmp.ne.s32.totalorder %s76, %s90
      %p92 = scmp.eq.s32.totalorder %s19, 0
      %p93 = por %p91, %p92
      %s95 = sadd.s32 %s94, 1
      %p98 = scmp.eq.s32.totalorder %s13, 1
      %p99 = scmp.ne.s32.totalorder %s94, %s96
      %p100 = scmp.eq.s32.totalorder %s13, 0
      %p101 = por %p99, %p100
      %p102 = scmp.ne.s32.totalorder %s94, %s96
      %p103 = scmp.eq.s32.totalorder %s18, 1
      %p104 = por %p102, %p103
      %p105 = scmp.ne.s32.totalorder %s96, %s97
      %p106 = scmp.eq.s32.totalorder %s18, 0
      %p107 = por %p105, %p106
      %p108 = scmp.ne.s32.totalorder %s96, %s97
      %p109 = scmp.eq.s32.totalorder %s19, 1
      %p110 = por %p108, %p109
      %p112 = scmp.ne.s32.totalorder %s97, %s111
      %p113 = scmp.eq.s32.totalorder %s19, 0
      %p114 = por %p112, %p113
      %p115 = scmp.le.s32.totalorder 1, %s13
      %p116 = scmp.lt.s32.totalorder %s13, 3
      %p117 = pnand %p115, %p116
      %p118 = pneg %p117
      // Predicated region
      $region9: #{tpu_custom_call.1} parent=5 // pred_check
        _
      $region10: #{tpu_custom_call.1} parent=5 // pred_check_branch
        %120 = sbr.rel (%p117) target = $region12
      $region11: #{tpu_custom_call.1} parent=5 // pred_region
        %s121 = ssub.s32 %s13, 1
        // Predicated region
        $region13: #{tpu_custom_call.1} parent=11 // pred_check
          %p122 = pneg %p86
        $region14: #{tpu_custom_call.1} parent=11 // pred_check_branch
          %124 = sbr.rel (%p122) target = $region16
        $region15: #{tpu_custom_call.1} parent=11 // pred_region
          _
        $region16: #{tpu_custom_call.1} parent=11 // pred_fallthru
          _
      $region12: #{tpu_custom_call.1} parent=5 // pred_fallthru
        _
      %p125 = scmp.lt.s32.totalorder %s13, 2
      // Predicated region
      $region17: #{tpu_custom_call.1} parent=5 // pred_check
        %p126 = pneg %p125
      $region18: #{tpu_custom_call.1} parent=5 // pred_check_branch
        %128 = sbr.rel (%p126) target = $region20
      $region19: #{tpu_custom_call.1} parent=5 // pred_region
        // Predicated region
        $region21: #{tpu_custom_call.1} parent=19 // pred_check
          %p129 = pneg %p33
        $region22: #{tpu_custom_call.1} parent=19 // pred_check_branch
          %131 = sbr.rel (%p129) target = $region24
        $region23: #{tpu_custom_call.1} parent=19 // pred_region
          %s132 = sand.u32 %s23, 1
          %s133 = scalar_lea.sflag [#allocation5], %s132
          %s134 = sand.u32 %s23, 1
          %s135 = smul.addr %s134, 4
          %s136 = scalar_lea.vmem [#allocation4], %s135
          %s138 = ssub.s32 64, 64
          %139 = vsyncadd %s133, %s138
          %s140 = smul.addr %s13, 64
          %s141 = scalar_lea.hbm %s0, %s140
          %s143 = sshll.u32 %s136, 4
          %s144 = int_to_ptr.vmem [resolvable:$true] %s143
          %146 = dma.hbm_to_vmem [thread:$0]  %s141, 64, %s144, %s133
        $region24: #{tpu_custom_call.1} parent=19 // pred_fallthru
          _
        // Predicated region
        $region25: #{tpu_custom_call.1} parent=19 // pred_check
          %p147 = pneg %p59
        $region26: #{tpu_custom_call.1} parent=19 // pred_check_branch
          %149 = sbr.rel (%p147) target = $region28
        $region27: #{tpu_custom_call.1} parent=19 // pred_region
          %p150 = scmp.lt.s32.totalorder %s13, 1
          %s151 = scalar_select %p150, %s13, 1
          %s152 = smul.addr %s151, 4
          %s153 = scalar_lea.vmem %s1, %s152
        $region28: #{tpu_custom_call.1} parent=19 // pred_fallthru
          _
      $region20: #{tpu_custom_call.1} parent=5 // pred_fallthru
        _
      %p154 = scmp.le.s32.totalorder 1, %s13
      %p155 = scmp.lt.s32.totalorder %s13, 3
      %p156 = pnand %p154, %p155
      %p157 = pneg %p156
      // Predicated region
      $region29: #{tpu_custom_call.1} parent=5 // pred_check
        _
      $region30: #{tpu_custom_call.1} parent=5 // pred_check_branch
        %159 = sbr.rel (%p156) target = $region32
      $region31: #{tpu_custom_call.1} parent=5 // pred_region
        %s160 = ssub.s32 %s13, 1
        %s161 = sand.u32 %s26, 1
        %s162 = scalar_lea.sflag [#allocation5], %s161
        %s163 = sand.u32 %s26, 1
        %s164 = smul.addr %s163, 4
        %s165 = scalar_lea.vmem [#allocation4], %s164
        // Predicated region
        $region33: #{tpu_custom_call.1} parent=31 // pred_check
          %p166 = pneg %p39
        $region34: #{tpu_custom_call.1} parent=31 // pred_check_branch
          %168 = sbr.rel (%p166) target = $region36
        $region35: #{tpu_custom_call.1} parent=31 // pred_region
          %169 = dma.done %s162, 64
        $region36: #{tpu_custom_call.1} parent=31 // pred_fallthru
          _
        %s170 = sand.u32 %s26, 1
        %s171 = scalar_lea.sflag [#allocation5], %s170
        %s172 = sand.u32 %s26, 1
        %s173 = smul.addr %s172, 4
        %s174 = scalar_lea.vmem [#allocation4], %s173
        %p175 = pneg %p39
        %p176 = pneg %p36
        %p177 = scmp.lt.s32.totalorder %s18, 1
        %s178 = scalar_select %p177, %s18, 1
        %s179 = smul.addr %s178, 4
        %s180 = scalar_lea.vmem %s1, %s179
        %p181 = pneg %p65
        %p182 = pneg %p62
        %p183 = pneg %p86
        %p184 = pneg %p83
        %p185 = pneg %p107
        %p186 = pneg %p104
        %p187 = scmp.lt.s32.totalorder %s18, 1
        %s188 = scalar_select %p187, %s18, 1
        %s189 = smul.addr %s188, 4
        %s190 = scalar_lea.vmem %s1, %s189
        %p191 = scmp.eq.s32.totalorder %s18, 0
        // Predicated region
        $region37: #{tpu_custom_call.1} parent=31 // pred_check
          %p192 = pneg %p191
        $region38: #{tpu_custom_call.1} parent=31 // pred_check_branch
          %194 = sbr.rel (%p192) target = $region40
        $region39: #{tpu_custom_call.1} parent=31 // pred_region
          %vm195 = vcmask 0
          %196 = vst.msk [vmem:[#allocation7] sm:$0x1] %vm195, 0.0
          %vm197 = vcmask 3072
          %198 = vst.msk [vmem:[#allocation2] sm:$0xf] %vm197, 0.0
          %199 = vst.msk [vmem:[#allocation3] sm:$0xf] %vm197, 0.0
        $region40: #{tpu_custom_call.1} parent=31 // pred_fallthru
          _
        %v200 = vld [vmem:[%s165] sm:$0xf]
        %v201 = vld [vmem:[%s190] sm:$0xf]
        %v202 = vld [vmem:[%s2] sm:$0xf]
        %v203 = vlaneseq
        %v204 = vand.u32 %v203, 127
        %205 = vrot.lane.b32.xlu0 %v201, 1
        %v206 = vpop.permute.xlu0 %205
        %vm207 = vcmp.ge.s32.totalorder %v204, 1
        %v208 = vsel %vm207, %v206, 0.0
        %v209 = vadd.f32 %v201, %v208
        %210 = vrot.lane.b32.xlu0 %v209, 2
        %v211 = vpop.permute.xlu0 %210
        %vm212 = vcmp.ge.s32.totalorder %v204, 2
        %v213 = vsel %vm212, %v211, 0.0
        %v214 = vadd.f32 %v209, %v213
        %215 = vrot.lane.b32.xlu0 %v214, 4
        %v216 = vpop.permute.xlu0 %215
        %vm217 = vcmp.ge.s32.totalorder %v204, 4
        %v218 = vsel %vm217, %v216, 0.0
        %v219 = vadd.f32 %v214, %v218
        %220 = vrot.lane.b32.xlu0 %v219, 8
        %v221 = vpop.permute.xlu0 %220
        %vm222 = vcmp.ge.s32.totalorder %v204, 8
        %v223 = vsel %vm222, %v221, 0.0
        %v224 = vadd.f32 %v219, %v223
        %225 = vrot.lane.b32.xlu0 %v224, 16
        %v226 = vpop.permute.xlu0 %225
        %vm227 = vcmp.ge.s32.totalorder %v204, 16
        %v228 = vsel %vm227, %v226, 0.0
        %v229 = vadd.f32 %v224, %v228
        %230 = vrot.lane.b32.xlu0 %v229, 32
        %v231 = vpop.permute.xlu0 %230
        %vm232 = vcmp.ge.s32.totalorder %v204, 32
        %v233 = vsel %vm232, %v231, 0.0
        %v234 = vadd.f32 %v229, %v233
        %235 = vrot.lane.b32.xlu0 %v234, 64
        %v236 = vpop.permute.xlu0 %235
        %vm237 = vcmp.ge.s32.totalorder %v204, 64
        %v238 = vsel %vm237, %v236, 0.0
        %v239 = vadd.f32 %v234, %v238
        %v240 = vld [vmem:[#allocation2] sm:$0xf]
        %242 = vset.pattern.permute.xlu0 0
        %243 = vperm.xlu0 %242, %v240
        %v244 = vpop.permute.xlu0 %243
        %v246 = vadd.f32 %v239, %v244
        %s247 = smul.u32 %s18, 128
        %v248 = vstv %s247
        %v249 = vadd.s32 %v248, %v204
        %v250 = vadd.s32 %v249, 1
        %v251 = vcvt.s32.f32 %v250
        %253 = vset.pattern.permute.xlu0 0
        %254 = vperm.xlu0 %253, %v202
        %v255 = vpop.permute.xlu0 %254
        %v257 = vsub.f32 %v255, %v246
        %v258 = vsub.f32 %v251, %v246
        %v259 = vadd.f32 %v255, %v258
        %v260 = vrcp.pop %v259
        %v261 = vmul.f32 %v257, %v260
        %v262 = vsub.f32 1.0, %v261
        %263 = vrot.lane.b32.xlu0 %v262, 1
        %v264 = vpop.permute.xlu0 %263
        %vm265 = vcmp.eq.s32.totalorder %v204, 0
        %v266 = vld [vmem:[#allocation3] sm:$0xf]
        %268 = vset.pattern.permute.xlu0 0
        %269 = vperm.xlu0 %268, %v266
        %v270 = vpop.permute.xlu0 %269
        %v272 = vsel %vm265, %v270, %v264
        %v273 = vsub.f32 %v262, %v272
        %v274 = vld [vmem:[#allocation7] sm:$0x1]
        %v275 = vmul.f32 %v200, %v273
        %vm276 = vcmask 1043456
        %v277 = vsel %vm276, %v275, 0.0
        %278 = vadd.xlane.f32.xlu0 %v277
        %v279 = vpop.xlane.xlu0 %278
        %v280 = vrot.slane %v279, 4
        %v281 = vadd.f32 %v279, %v280
        %v282 = vrot.slane %v281, 2
        %v283 = vadd.f32 %v281, %v282
        %v284 = vrot.slane %v283, 1
        %v285 = vadd.f32 %v283, %v284
        %s286 = vtos %v285
        %s287 = smul.f32 %s286, 0.25
        %v288 = vstv %s287
        %v289 = vadd.f32 %v274, %v288
        %vm290 = vcmask 0
        %291 = vst.msk [vmem:[#allocation7] sm:$0x1] %vm290, %v289
        %293 = vrot.lane.b32.xlu0 %v246, 1
        %v294 = vpop.permute.xlu0 %293
        %vm296 = vcmask 3072
        %297 = vst.msk [vmem:[#allocation2] sm:$0xf] %vm296, %v294
        %299 = vrot.lane.b32.xlu0 %v262, 1
        %v300 = vpop.permute.xlu0 %299
        %302 = vst.msk [vmem:[#allocation3] sm:$0xf] %vm296, %v300
        // Predicated region
        $region41: #{tpu_custom_call.1} parent=31 // pred_check
          %p303 = pneg %p104
        $region42: #{tpu_custom_call.1} parent=31 // pred_check_branch
          %305 = sbr.rel (%p303) target = $region44
        $region43: #{tpu_custom_call.1} parent=31 // pred_region
          %s307 = ssub.s32 16, 16
          %308 = vsyncadd [#allocation6], %s307
          %s310 = sshll.u32 [#allocation7], 4
          %s311 = int_to_ptr.vmem [resolvable:$true] %s310
          %313 = dma.vmem_to_hbm [thread:$0]  %s311, 16, %s3, [#allocation6]
        $region44: #{tpu_custom_call.1} parent=31 // pred_fallthru
          _
        // Predicated region
        $region45: #{tpu_custom_call.1} parent=31 // pred_check
          %p314 = pneg %p104
        $region46: #{tpu_custom_call.1} parent=31 // pred_check_branch
          %316 = sbr.rel (%p314) target = $region48
        $region47: #{tpu_custom_call.1} parent=31 // pred_region
          %317 = dma.done [#allocation6], 16
        $region48: #{tpu_custom_call.1} parent=31 // pred_fallthru
          _
      $region32: #{tpu_custom_call.1} parent=5 // pred_fallthru
        _
      %p318 = scmp.le.s32.totalorder 2, %s13
      // Predicated region
      $region49: #{tpu_custom_call.1} parent=5 // pred_check
        %p319 = pneg %p318
      $region50: #{tpu_custom_call.1} parent=5 // pred_check_branch
        %321 = sbr.rel (%p319) target = $region52
      $region51: #{tpu_custom_call.1} parent=5 // pred_region
        %s322 = ssub.s32 %s13, 2
      $region52: #{tpu_custom_call.1} parent=5 // pred_fallthru
        _
    $region6: #{tpu_custom_call.1} parent=1 // loop_footer
      %s17 = sadd.s32 1, %s13
    $region7: #{tpu_custom_call.1} parent=1 // loop_footer_branch
      %12 = sbr.rel target = $region3
    $region8: #{tpu_custom_call.1} parent=1 // loop_exit
      _
    %323 = vsyncpa [#allocation5], 1
    %s324 = scalar_lea.sflag [#allocation5], 1
    %325 = vsyncpa %s324, 1
    %326 = vsyncpa [#allocation6], 1
    %s327 = scalar_lea.sflag [#allocation6], 1
    %328 = vsyncpa %s327, 1

</llo_original>
